<compile_context>
chip_gen: v7x
topology: tpu7x:2x2x1
jax: 0.10.0
libtpu: 0.0.40
codegen_flags: <defaults>
</compile_context>

<pallas_src>
import functools

import numpy as np
import jax
import jax.numpy as jnp
from jax.experimental import pallas as pl
from jax.experimental.pallas import tpu as pltpu


def _silu(x):
    # SiLU via sigmoid(x) = 0.5 * (1 + tanh(x/2)):
    #  * tanh uses the EUP (its own VLIW slot) -> frees VALU slots,
    #  * no inf intermediate for large negative x (unlike exp(-x)).
    return x * (0.5 * jnp.tanh(0.5 * x) + 0.5)


# ---------------------------------------------------------------------------
# One-time probe of the rotate direction used by pltpu.roll (cached per
# backend, executed through the same pallas path as the main kernel) so the
# 3x3 tap shifts are correct regardless of the roll sign convention.
# ---------------------------------------------------------------------------
_ROLL_SIGN = {}


def _roll_probe_kernel(x_ref, o_ref):
    o_ref[...] = pltpu.roll(x_ref[...], 1, axis=1)


def _roll_shift_sign():
    backend = jax.default_backend()
    if backend not in _ROLL_SIGN:
        x = jnp.broadcast_to(jnp.arange(256, dtype=jnp.float32)[None, :], (8, 256))
        y = pl.pallas_call(
            _roll_probe_kernel,
            out_shape=jax.ShapeDtypeStruct((8, 256), jnp.float32),
        )(x)
        v = float(jax.block_until_ready(y)[0, 0])
        # np.roll convention: rolled[0] == x[-1] == 255 -> need shift = -s
        _ROLL_SIGN[backend] = -1 if v == 255.0 else 1
    return _ROLL_SIGN[backend]


# ---------------------------------------------------------------------------
# Boundary-validity masks for the 9 conv taps (t = (dy+1)*3 + (dx+1)), for a
# single image; the wrapper tiles them along the lane axis per image so rolls
# across image boundaries inside the merged batch are zeroed as well.
# ---------------------------------------------------------------------------
def _tap_masks(H, W):
    p = np.arange(H * W)
    x, y = p % W, p // W
    masks = []
    for dy in (-1, 0, 1):
        for dx in (-1, 0, 1):
            ok = (x + dx >= 0) & (x + dx < W) & (y + dy >= 0) & (y + dy < H)
            masks.append(ok.astype(np.float32))
    return np.stack(masks)  # (9, H*W)


# ---------------------------------------------------------------------------
# Fused C2f kernel: one grid step == one lane block (a group of whole images),
# activations in (C, lanes) layout with lanes = images_per_block * H * W.
# ---------------------------------------------------------------------------
def _c2f_kernel(x_ref, mask_ref, w1_ref, b1_ref, wm1_ref, bm1_ref,
                wm2_ref, bm2_ref, w2_ref, b2_ref, o_ref, ycat_ref,
                *, n, shortcut, width, roll_sign):
    lanes = x_ref.shape[-1]
    cdt = w1_ref.dtype                                 # matmul operand dtype (bf16)
    masks = [mask_ref[t] for t in range(9)]            # each (1, lanes) f32

    def conv3x3_silu(h, w, b):
        # h: (cin, lanes) f32, w: (cout, 9*cin) tap-major bf16, b: (cout, 1) f32
        taps = []
        hc = h.astype(cdt)                              # cast once for center tap
        for t in range(9):
            dy, dx = t // 3 - 1, t % 3 - 1
            s = dy * width + dx
            if s == 0:
                taps.append(hc)                         # center tap: no shift/mask
            else:
                sh = pltpu.roll(h, (roll_sign * s) % lanes, axis=1)  # XLU rotate
                taps.append((sh * masks[t]).astype(cdt))  # mask in f32, store bf16
        stack = jnp.concatenate(taps, axis=0)           # (9*cin, lanes) bf16, VMEM
        acc = jnp.dot(w, stack, preferred_element_type=jnp.float32)
        return _silu(acc + b)

    # cv1: 1x1 conv == (2c, c1) @ (c1, lanes) on the MXU, bias + SiLU fused
    x = x_ref[...].astype(cdt)                                          # (c1, lanes)
    y = _silu(jnp.dot(w1_ref[...], x, preferred_element_type=jnp.float32)
              + b1_ref[...])                                            # (2c,) f32
    c = y.shape[0] // 2

    # CSP split/concat fused: write each part into its slice of the bf16
    # cv2-operand scratch as it is produced (no final concat copy).
    ycat_ref[0:2 * c, :] = y.astype(cdt)                # y0 | y1 (16-row aligned)
    h = y[c:]                                           # second half, f32
    for i in range(n):                                  # chained bottlenecks
        z = conv3x3_silu(h, wm1_ref[i], bm1_ref[i])
        z = conv3x3_silu(z, wm2_ref[i], bm2_ref[i])
        h = h + z if shortcut else z
        ycat_ref[(2 + i) * c:(3 + i) * c, :] = h.astype(cdt)

    # cv2: one (c2, (2+n)c) @ ((2+n)c, lanes) matmul straight off the scratch
    out = _silu(jnp.dot(w2_ref[...], ycat_ref[...],
                        preferred_element_type=jnp.float32) + b2_ref[...])
    o_ref[...] = out.astype(o_ref.dtype)


# ---------------------------------------------------------------------------
# Wrapper: weight packing + single pallas_call.
# ---------------------------------------------------------------------------
def c2f_forward(x_nchw, params, *, compute_dtype=jnp.bfloat16, num_lane_blocks=None):
    N, C1, H, W = x_nchw.shape
    HW = H * W
    n = len(params["m"])
    c = params["c"]
    c2 = params["cv2"][0].shape[0]
    shortcut = params["shortcut"]
    assert C1 % 8 == 0 and c % 8 == 0 and c2 % 8 == 0  # sublane alignment (16 best)

    # Default: single grid step with the whole batch folded into lanes.
    # Set num_lane_blocks=2 on v7x to shard the lane extent across both TCs.
    if num_lane_blocks is None:
        num_lane_blocks = 1
    assert N % num_lane_blocks == 0
    ipb = N // num_lane_blocks                 # whole images per lane block
    LB = ipb * HW                              # lanes per block

    # 1x1 conv weights -> (Cout, Cin) matmul weights
    w1 = params["cv1"][0][:, :, 0, 0].astype(compute_dtype)            # (2c, C1)
    b1 = params["cv1"][1].reshape(-1, 1).astype(jnp.float32)
    w2 = params["cv2"][0][:, :, 0, 0].astype(compute_dtype)            # (c2, (2+n)c)
    b2 = params["cv2"][1].reshape(-1, 1).astype(jnp.float32)

    # 3x3 conv weights OIHW -> (Cout, 9*Cin), tap-major (t = ky*3 + kx)
    def pack3x3(w):
        co, ci = w.shape[0], w.shape[1]
        return jnp.transpose(w, (0, 2, 3, 1)).reshape(co, 9 * ci).astype(compute_dtype)

    wm1 = jnp.stack([pack3x3(m[0]) for m in params["m"]])              # (n, c, 9c)
    bm1 = jnp.stack([m[1].reshape(-1, 1) for m in params["m"]]).astype(jnp.float32)
    wm2 = jnp.stack([pack3x3(m[2]) for m in params["m"]])              # (n, c, 9c)
    bm2 = jnp.stack([m[3].reshape(-1, 1) for m in params["m"]]).astype(jnp.float32)

    # Per-image tap masks, tiled for the images inside one lane block.
    mask = jnp.asarray(np.tile(_tap_masks(H, W), (1, ipb))[:, None, :])  # (9,1,LB)

    # (N, C1, H, W) -> (C1, N*HW): lane axis is image-major then row-major.
    xf = jnp.transpose(x_nchw, (1, 0, 2, 3)).reshape(C1, N * HW)

    kernel = functools.partial(_c2f_kernel, n=n, shortcut=shortcut,
                               width=W, roll_sign=_roll_shift_sign())

    # Cost estimate (helps XLA schedule neighbors around the custom call).
    macs_per_lane = 2 * c * C1 + n * 2 * (9 * c * c) + c2 * (2 + n) * c
    weight_bytes = int((w1.size + wm1.size + wm2.size + w2.size) * 2
                       + (b1.size + bm1.size + bm2.size + b2.size) * 4)
    cost = pl.CostEstimate(
        flops=int(2 * N * HW * macs_per_lane),
        transcendentals=int(N * HW * (2 * c + n * 2 * c + c2)),
        bytes_accessed=int(N * HW * (C1 + c2) * 4 + weight_bytes + 9 * LB * 4),
    )

    # Explicit scoped-VMEM budget: generous estimate of the per-block working
    # set, clamped to [32, 64] MiB (safe on v5e/v6e/v7x physical VMEM).
    cb = jnp.dtype(compute_dtype).itemsize
    block_bytes = (2 * C1 * LB * 4            # x block (double-buffered)
                   + 2 * c2 * LB * 4          # out block (double-buffered)
                   + 9 * LB * 4               # tap masks
                   + (2 + n) * c * LB * cb    # ycat scratch (cv2 operand)
                   + 9 * c * LB * (4 + cb)    # tap stack + shifted-tap temps
                   + 8 * c * LB * 4           # y / h / z live f32 activations
                   + weight_bytes)
    vmem_limit = int(min(64 * 2**20, max(32 * 2**20, 2 * block_bytes)))

    out = pl.pallas_call(
        kernel,
        out_shape=jax.ShapeDtypeStruct((c2, N * HW), x_nchw.dtype),
        grid=(num_lane_blocks,),
        in_specs=[
            pl.BlockSpec((C1, LB), lambda i: (0, i)),                  # x (lane block)
            pl.BlockSpec((9, 1, LB), lambda i: (0, 0, 0)),             # tap masks
            pl.BlockSpec((2 * c, C1), lambda i: (0, 0)),               # cv1 w
            pl.BlockSpec((2 * c, 1), lambda i: (0, 0)),                # cv1 b
            pl.BlockSpec((n, c, 9 * c), lambda i: (0, 0, 0)),          # bottleneck cv1 w
            pl.BlockSpec((n, c, 1), lambda i: (0, 0, 0)),              # bottleneck cv1 b
            pl.BlockSpec((n, c, 9 * c), lambda i: (0, 0, 0)),          # bottleneck cv2 w
            pl.BlockSpec((n, c, 1), lambda i: (0, 0, 0)),              # bottleneck cv2 b
            pl.BlockSpec((c2, (2 + n) * c), lambda i: (0, 0)),         # cv2 w
            pl.BlockSpec((c2, 1), lambda i: (0, 0)),                   # cv2 b
        ],
        out_specs=pl.BlockSpec((c2, LB), lambda i: (0, i)),
        scratch_shapes=[pltpu.VMEM(((2 + n) * c, LB), compute_dtype)],  # fused concat
        compiler_params=pltpu.CompilerParams(
            dimension_semantics=("parallel",),
            vmem_limit_bytes=vmem_limit),
        cost_estimate=cost,
    )(xf, mask, w1, b1, wm1, bm1, wm2, bm2, w2, b2)
    return jnp.transpose(out.reshape(c2, N, H, W), (1, 0, 2, 3))


# ---------------------------------------------------------------------------
# Deterministic parameter construction with BatchNorm folding.
# ---------------------------------------------------------------------------
def _make_folded_conv(key, cin, cout, k):
    k1, k2, k3, k4, k5 = jax.random.split(key, 5)
    w = jax.random.normal(k1, (cout, cin, k, k), jnp.float32) * 0.1    # OIHW
    gamma = jax.random.uniform(k2, (cout,), jnp.float32, 0.5, 1.5)
    beta = jax.random.normal(k3, (cout,), jnp.float32) * 0.1
    mean = jax.random.normal(k4, (cout,), jnp.float32) * 0.1
    var = jax.random.uniform(k5, (cout,), jnp.float32, 0.5, 1.5)
    eps = 1e-3
    scale = gamma / jnp.sqrt(var + eps)
    return w * scale[:, None, None, None], beta - mean * scale


def init_c2f_params(key, c1, c2, n=1, shortcut=True, e=0.5):
    c = int(c2 * e)
    keys = jax.random.split(key, 2 + 2 * n)
    cv1 = _make_folded_conv(keys[0], c1, 2 * c, 1)
    cv2 = _make_folded_conv(keys[1], (2 + n) * c, c2, 1)
    m = []
    for i in range(n):
        w1, b1 = _make_folded_conv(keys[2 + 2 * i], c, c, 3)   # rate=1.0 -> hidden = c
        w2, b2 = _make_folded_conv(keys[3 + 2 * i], c, c, 3)
        m.append((w1, b1, w2, b2))
    return dict(c=c, shortcut=shortcut, cv1=cv1, cv2=cv2, m=m)


# ---------------------------------------------------------------------------
# Pure-JAX reference (f32) for correctness checking.
# ---------------------------------------------------------------------------
def _ref_conv_silu(x_nchw, w_oihw, b, pad):
    y = jax.lax.conv_general_dilated(
        x_nchw, w_oihw, window_strides=(1, 1),
        padding=[(pad, pad), (pad, pad)],
        dimension_numbers=("NCHW", "OIHW", "NCHW"))
    return _silu(y + b[None, :, None, None])


def c2f_forward_ref(x_nchw, params):
    c = params["c"]
    y = _ref_conv_silu(x_nchw, *params["cv1"], pad=0)
    parts = [y[:, :c], y[:, c:]]
    h = parts[1]
    for (w1, b1, w2, b2) in params["m"]:
        z = _ref_conv_silu(h, w1, b1, pad=1)
        z = _ref_conv_silu(z, w2, b2, pad=1)
        h = h + z if params["shortcut"] else z
        parts.append(h)
    return _ref_conv_silu(jnp.concatenate(parts, axis=1), *params["cv2"], pad=0)


if __name__ == "__main__":
    key = jax.random.PRNGKey(0)
    k_x, k_p = jax.random.split(key)

    # C2f(c1=16, c2=32, n=2, shortcut=True, e=0.5) -> hidden c = 16
    # (c = 16 makes every CSP part / tap-stack slice a full packed bf16
    #  sublane tile -> no relayout around the matmuls or the scratch writes).
    N, C1, H, W = 2, 16, 16, 16
    C2_OUT = 32
    x = jax.random.normal(k_x, (N, C1, H, W), jnp.float32)
    params = init_c2f_params(k_p, c1=C1, c2=C2_OUT, n=2, shortcut=True, e=0.5)

    _roll_shift_sign()                              # resolve rotate convention once
    fwd = jax.jit(lambda xx: c2f_forward(xx, params))
    out = jax.block_until_ready(fwd(x))

    ref = jax.block_until_ready(c2f_forward_ref(x, params))
    assert out.shape == ref.shape == (N, C2_OUT, H, W)
    diff = jnp.abs(out - ref)
    max_err = float(jnp.max(diff))
    mean_err = float(jnp.mean(diff))
    # bf16 matmul operands with f32 accumulation -> loose-but-meaningful tolerances
    assert max_err < 1e-1 and mean_err < 2e-2, (max_err, mean_err)

    print("KERNEL_OK")
</pallas_src>

<mosaic_0001>
module attributes {stable_mosaic.version = 11 : i64} {
  func.func @_roll_probe_kernel(%arg0: memref<8x256xf32, #tpu.memory_space<vmem>>, %arg1: memref<8x256xf32, #tpu.memory_space<vmem>>) attributes {dimension_semantics = [], scalar_prefetch = 0 : i64, scratch_operands = 0 : i64, tpu.core_type = #tpu.core_type<tc>} {
    %c0 = arith.constant 0 : index
    %c0_0 = arith.constant 0 : index
    %0 = vector.load %arg0[%c0, %c0_0] : memref<8x256xf32, #tpu.memory_space<vmem>>, vector<8x256xf32>
    %c1_i32 = arith.constant 1 : i32
    %1 = tpu.dynamic_rotate %0 by %c1_i32 dim 1 : vector<8x256xf32>, i32 -> vector<8x256xf32>
    %c0_1 = arith.constant 0 : index
    %c0_2 = arith.constant 0 : index
    %2 = vector.load %arg1[%c0_1, %c0_2] : memref<8x256xf32, #tpu.memory_space<vmem>>, vector<8x256xf32>
    tpu.vector_store %arg1[%c0_1, %c0_2], %1 {strides = array<i32>} : memref<8x256xf32, #tpu.memory_space<vmem>>, vector<8x256xf32>,
    return
  }
}

</mosaic_0001>

<llo_original>
// kernel: tpu_custom_call.1
$region0: #{tpu_custom_call.1}
  #allocation0 [shape = 'u32[]', space=smem, size = 0x4, offset = 0x4, fixed_abs, tag = 'smem constant byte address 0x4 - core index']
  #allocation1 [shape = 'u32[144,128]{1,0:T(1,128)}', space=vmem, size = 0x12000, scoped, tag = 'internal scratch']
  %s0 = inlined_call_operand.hbm [shape: f32[8,256], index: 0, kind: input, shape index: {}]
  %s1 = inlined_call_operand.hbm [shape: f32[8,256], index: 1, kind: output, shape index: {}]
  %s2 = sld [smem:[#allocation0]]
  $region18: #{tpu_custom_call.1} parent=0
    _
  %s4 = ssub.s32 1, %s2
  %s5 = scalar_select 0, %s4, %s2
  $region1: #{tpu_custom_call.1} parent=0
    #allocation2 [shape = 'u8[8192]{0}', space=vmem, size = 0x2000, scoped, tag = 'input window, operand 0, single buffered']
    #allocation3 [shape = 's32[1]{0}', space=sflag, size = 0x4, scoped, tag = 'scoped memory for tpu_custom_call.1']
    #allocation4 [shape = 's32[1]{0}', space=sflag, size = 0x4, scoped, tag = 'scoped memory for tpu_custom_call.1']
    #allocation5 [shape = 'u8[8192]{0}', space=vmem, size = 0x2000, scoped, tag = 'output window, operand 0, single buffered']
    %6 = vsyncpa [#allocation3], 0
    %7 = vsyncpa [#allocation4], 0
    // Predicated region
    $region2: #{tpu_custom_call.1} parent=1 // pred_check
      _
    $region3: #{tpu_custom_call.1} parent=1 // pred_check_branch
      %9 = sbr.rel (0) target = $region5
    $region4: #{tpu_custom_call.1} parent=1 // pred_region
      %s11 = ssub.s32 256, 256
      %12 = vsyncadd [#allocation3], %s11
      %s14 = sshll.u32 [#allocation2], 4
      %s15 = int_to_ptr.vmem [resolvable:$true] %s14
      %17 = dma.hbm_to_vmem [thread:$0]  %s0, 256, %s15, [#allocation3]
    $region5: #{tpu_custom_call.1} parent=1 // pred_fallthru
      _
    // Predicated region
    $region6: #{tpu_custom_call.1} parent=1 // pred_check
      _
    $region7: #{tpu_custom_call.1} parent=1 // pred_check_branch
      %19 = sbr.rel (0) target = $region9
    $region8: #{tpu_custom_call.1} parent=1 // pred_region
      %20 = dma.done [#allocation3], 256
    $region9: #{tpu_custom_call.1} parent=1 // pred_fallthru
      _
    %v21 = vld [vmem:[#allocation2] sm:$0xff]
    %v22 = vld [vmem:[#allocation2 + $0x8] sm:$0xff]
    %23 = vrot.lane.b32.xlu0 %v21, 1
    %v24 = vpop.permute.xlu0 %23
    %25 = vrot.lane.b32.xlu0 %v22, 1
    %v26 = vpop.permute.xlu0 %25
    %v27 = vlaneseq
    %v28 = vand.u32 %v27, 127
    %vm29 = vcmp.lt.s32.totalorder %v28, 1
    %v30 = vsel %vm29, %v24, %v26
    %v31 = vsel %vm29, %v26, %v24
    %32 = vst [vmem:[#allocation5] sm:$0xff] %v31
    %33 = vst [vmem:[#allocation5 + $0x8] sm:$0xff] %v30
    // Predicated region
    $region10: #{tpu_custom_call.1} parent=1 // pred_check
      _
    $region11: #{tpu_custom_call.1} parent=1 // pred_check_branch
      %35 = sbr.rel (0) target = $region13
    $region12: #{tpu_custom_call.1} parent=1 // pred_region
      %s37 = ssub.s32 256, 256
      %38 = vsyncadd [#allocation4], %s37
      %s40 = sshll.u32 [#allocation5], 4
      %s41 = int_to_ptr.vmem [resolvable:$true] %s40
      %43 = dma.vmem_to_hbm [thread:$0]  %s41, 256, %s1, [#allocation4]
    $region13: #{tpu_custom_call.1} parent=1 // pred_fallthru
      _
    // Predicated region
    $region14: #{tpu_custom_call.1} parent=1 // pred_check
      _
    $region15: #{tpu_custom_call.1} parent=1 // pred_check_branch
      %45 = sbr.rel (0) target = $region17
    $region16: #{tpu_custom_call.1} parent=1 // pred_region
      %46 = dma.done [#allocation4], 256
    $region17: #{tpu_custom_call.1} parent=1 // pred_fallthru
      _
    %47 = vsyncpa [#allocation3], 1
    %48 = vsyncpa [#allocation4], 1

</llo_original>
